<compile_context>
chip_gen: v7x
topology: tpu7x:2x2x1
jax: 0.10.0
libtpu: 0.0.40
codegen_flags: <defaults>
</compile_context>

<pallas_src>
import jax
import jax.numpy as jnp
from jax.experimental import pallas as pl
from jax.experimental.pallas import tpu as pltpu


def _make_rope_kernel(use_roll):
    def rope_kernel(q_ref, k_ref, cos_ref, sin_ref, qo_ref, ko_ref):
        # q_ref/k_ref: (1, Ht, tS, D); cos_ref/sin_ref: (tS, D) or (1, tS, D)
        # (numpy broadcasting handles both against the 4-D q/k blocks).
        q = q_ref[...]
        k = k_ref[...]
        cos = cos_ref[...]
        sin = sin_ref[...]  # already carries the rotate_half sign pattern
        half = q.shape[-1] // 2
        if use_roll:
            # rotate_half(x) == sign * roll(x, D/2); sign lives in sin already.
            last = q.ndim - 1  # pltpu.roll needs a non-negative axis
            q_rot = pltpu.roll(q, shift=half, axis=last)
            k_rot = pltpu.roll(k, shift=half, axis=last)
        else:
            # D not lane-aligned: keep the proven slice+concat form.
            # TODO(synk): restructure D<128 fallback to a lane-dense [B,S,H*D]
            # layout to avoid masked partial stores and concat relayouts.
            q_rot = jnp.concatenate((q[..., half:], q[..., :half]), axis=-1)
            k_rot = jnp.concatenate((k[..., half:], k[..., :half]), axis=-1)
        qo_ref[...] = q * cos + q_rot * sin
        ko_ref[...] = k * cos + k_rot * sin

    return rope_kernel


def _chip_budget():
    """(per-q/k-block byte cap, vmem_limit_bytes), chip-aware with a safe fallback."""
    try:
        vmem_cap = int(pltpu.get_tpu_info().vmem_capacity_bytes)
    except Exception:
        vmem_cap = 64 * 1024 * 1024  # assume v7x-like (smallest VMEM)
    if vmem_cap >= 96 * 1024 * 1024:  # v5e / v6e: 128 MiB physical VMEM
        return 4 * 1024 * 1024, 96 * 1024 * 1024
    # v7x (64 MiB physical) / unknown: keep blocks and limit conservative.
    return 2 * 1024 * 1024, 40 * 1024 * 1024


def _choose_tiles(B, H, S, D, itemsize, block_cap_bytes):
    """Pick (heads_per_block, seq_tile): big blocks, VMEM-safe, megacore-aware."""
    sublane = {4: 8, 2: 16, 1: 32}.get(itemsize, 8)
    tS = S  # full-S block always satisfies the (8,128) tiling rule
    for cand in (2048, 1024, 512, 256, 128, 64, 32, 16, 8):
        if cand <= S and S % cand == 0 and cand % sublane == 0:
            tS = cand
            break
    per_head_bytes = tS * D * itemsize
    max_ht = max(1, block_cap_bytes // per_head_bytes)
    # Megacore (v7x has 2 TCs): keep >= 2 grid steps so no core sits idle.
    if B * (S // tS) == 1 and H > 1:
        max_ht = min(max_ht, max(1, H // 2))
    Ht = 1
    for cand in range(min(H, max_ht), 0, -1):
        if H % cand == 0:
            Ht = cand
            break
    return Ht, tS


class LlamaRotaryEmbedding:
    """JAX/Pallas port of the PyTorch LlamaRotaryEmbedding module."""

    def __init__(self, dim, max_position_embeddings=2048, base=10000):
        self.dim = dim
        self.max_position_embeddings = max_position_embeddings
        self.base = base
        self.inv_freq = 1.0 / (
            base ** (jnp.arange(0, dim, 2, dtype=jnp.float32) / dim))
        self._set_cos_sin_cache(max_position_embeddings)

    def _set_cos_sin_cache(self, seq_len):
        self.max_seq_len_cached = seq_len
        t = jnp.arange(seq_len, dtype=self.inv_freq.dtype)
        freqs = jnp.einsum("i,j->ij", t, self.inv_freq)
        emb = jnp.concatenate((freqs, freqs), axis=-1)  # [seq_len, dim]
        # f32 masters (never downcast); per-dtype casts cached lazily below.
        self.cos_cached = jnp.cos(emb)
        self.sin_cached = jnp.sin(emb)  # kept for reference parity
        half = self.dim // 2
        sign = jnp.concatenate(
            (-jnp.ones((half,), jnp.float32), jnp.ones((half,), jnp.float32)))
        self.sin_signed_cached = self.sin_cached * sign
        self._typed_tables_cache = {}

    def _typed_tables(self, dtype):
        key = jnp.dtype(dtype)
        if key not in self._typed_tables_cache:
            self._typed_tables_cache[key] = (
                self.cos_cached.astype(key),
                self.sin_signed_cached.astype(key),
            )
        return self._typed_tables_cache[key]

    def __call__(self, q, k, seq_len=None, position_ids=None):
        B, H, S, D = q.shape
        assert k.shape == q.shape
        assert position_ids is not None and position_ids.shape == (B, S)
        if seq_len is None:
            seq_len = S
        if seq_len > self.max_seq_len_cached:
            self._set_cos_sin_cache(seq_len)

        cos_tab, sin_tab = self._typed_tables(q.dtype)  # [max_pos, D], q.dtype

        itemsize = jnp.dtype(q.dtype).itemsize
        block_cap, vmem_limit = _chip_budget()
        Ht, tS = _choose_tiles(B, H, S, D, itemsize, block_cap)
        # Head-block axis innermost; seq outermost (best cos/sin tile reuse).
        grid = (S // tS, B, H // Ht)

        # Fast path: all batch rows of position_ids identical (typical arange
        # positions) -> one [S, D] cos/sin slab shared across the batch.
        shared_rows = False
        try:
            pid = jax.device_get(position_ids)
            shared_rows = bool((pid == pid[:1]).all())
        except Exception:  # traced position_ids (inside jit): use general path
            shared_rows = False

        if shared_rows:
            cos = jnp.take(cos_tab, position_ids[0], axis=0)  # [S, D]
            sin = jnp.take(sin_tab, position_ids[0], axis=0)
            cs_spec = pl.BlockSpec((tS, D), lambda s, b, h: (s, 0))
        else:
            # TODO(synk): fuse this [B,S,D] gather into the kernel for ragged
            # position_ids (scalar-prefetch + in-kernel row gather / EUP sin-cos).
            cos = jnp.take(cos_tab, position_ids, axis=0)  # [B, S, D]
            sin = jnp.take(sin_tab, position_ids, axis=0)
            cs_spec = pl.BlockSpec((1, tS, D), lambda s, b, h: (b, s, 0))

        qk_spec = pl.BlockSpec((1, Ht, tS, D), lambda s, b, h: (b, h, s, 0))

        kernel = _make_rope_kernel(use_roll=(D % 128 == 0))
        q_out, k_out = pl.pallas_call(
            kernel,
            out_shape=(
                jax.ShapeDtypeStruct(q.shape, q.dtype),
                jax.ShapeDtypeStruct(k.shape, k.dtype),
            ),
            grid=grid,
            in_specs=[qk_spec, qk_spec, cs_spec, cs_spec],
            out_specs=(qk_spec, qk_spec),
            compiler_params=pltpu.CompilerParams(
                dimension_semantics=("parallel", "parallel", "arbitrary"),
                vmem_limit_bytes=vmem_limit,
            ),
        )(q, k, cos, sin)
        return q_out, k_out


def _rotate_half(x):
    half = x.shape[-1] // 2
    return jnp.concatenate((-x[..., half:], x[..., :half]), axis=-1)


def _reference(q, k, cos_cached, sin_cached, position_ids):
    cos = cos_cached[position_ids][:, None, :, :]
    sin = sin_cached[position_ids][:, None, :, :]
    return q * cos + _rotate_half(q) * sin, k * cos + _rotate_half(k) * sin


def _run_case(key, B, H, S, D, max_pos, shared_positions):
    kq, kk, kp = jax.random.split(key, 3)
    q = jax.random.normal(kq, (B, H, S, D), dtype=jnp.float32)
    k = jax.random.normal(kk, (B, H, S, D), dtype=jnp.float32)
    if shared_positions:
        start = 3
        position_ids = jnp.broadcast_to(
            jnp.arange(start, start + S, dtype=jnp.int32), (B, S))
    else:
        position_ids = jax.random.randint(kp, (B, S), 0, max_pos, dtype=jnp.int32)

    rope = LlamaRotaryEmbedding(dim=D, max_position_embeddings=max_pos)
    q_exp, k_exp = _reference(
        q, k,
        rope.cos_cached.astype(q.dtype), rope.sin_cached.astype(q.dtype),
        position_ids)

    q_out, k_out = rope(q, k, seq_len=S, position_ids=position_ids)
    jax.block_until_ready((q_out, k_out))

    assert jnp.allclose(q_out, q_exp, atol=1e-5, rtol=1e-5)
    assert jnp.allclose(k_out, k_exp, atol=1e-5, rtol=1e-5)


if __name__ == "__main__":
    key = jax.random.PRNGKey(0)
    k1, k2, k3 = jax.random.split(key, 3)
    # Lane-aligned head dim (D=128, real Llama case): pltpu.roll fast path,
    # ragged per-batch position_ids -> general [B,S,D] cos/sin path.
    _run_case(k1, B=2, H=4, S=8, D=128, max_pos=64, shared_positions=False)
    # Small head dim (D=32): slice+concat fallback path.
    _run_case(k2, B=2, H=4, S=16, D=32, max_pos=64, shared_positions=False)
    # Contiguous/shared positions: [S,D] cos/sin fast path (no per-batch dup).
    _run_case(k3, B=2, H=4, S=8, D=128, max_pos=64, shared_positions=True)
    print("KERNEL_OK")
</pallas_src>

<mosaic_0001>
module attributes {stable_mosaic.version = 11 : i64} {
  func.func @rope_kernel(%arg0: i32, %arg1: i32, %arg2: i32, %arg3: memref<1x4x8x128xf32, #tpu.memory_space<vmem>>, %arg4: memref<1x4x8x128xf32, #tpu.memory_space<vmem>>, %arg5: memref<1x8x128xf32, #tpu.memory_space<vmem>>, %arg6: memref<1x8x128xf32, #tpu.memory_space<vmem>>, %arg7: memref<1x4x8x128xf32, #tpu.memory_space<vmem>>, %arg8: memref<1x4x8x128xf32, #tpu.memory_space<vmem>>) attributes {dimension_semantics = [#tpu.dimension_semantics<parallel>, #tpu.dimension_semantics<parallel>, #tpu.dimension_semantics<arbitrary>], iteration_bounds = array<i64: 1, 2, 1>, scalar_prefetch = 0 : i64, scratch_operands = 0 : i64, tpu.core_type = #tpu.core_type<tc>, window_params = [{transform_indices = @transform_0, window_bounds = array<i64: 1, 4, 8, 128>}, {transform_indices = @transform_1, window_bounds = array<i64: 1, 4, 8, 128>}, {transform_indices = @transform_2, window_bounds = array<i64: 1, 8, 128>}, {transform_indices = @transform_3, window_bounds = array<i64: 1, 8, 128>}, {transform_indices = @transform_4, window_bounds = array<i64: 1, 4, 8, 128>}, {transform_indices = @transform_5, window_bounds = array<i64: 1, 4, 8, 128>}]} {
    %c0 = arith.constant 0 : index
    %c0_0 = arith.constant 0 : index
    %c0_1 = arith.constant 0 : index
    %c0_2 = arith.constant 0 : index
    %0 = vector.load %arg3[%c0, %c0_0, %c0_1, %c0_2] : memref<1x4x8x128xf32, #tpu.memory_space<vmem>>, vector<1x4x8x128xf32>
    %c0_3 = arith.constant 0 : index
    %c0_4 = arith.constant 0 : index
    %c0_5 = arith.constant 0 : index
    %c0_6 = arith.constant 0 : index
    %1 = vector.load %arg4[%c0_3, %c0_4, %c0_5, %c0_6] : memref<1x4x8x128xf32, #tpu.memory_space<vmem>>, vector<1x4x8x128xf32>
    %c0_7 = arith.constant 0 : index
    %c0_8 = arith.constant 0 : index
    %c0_9 = arith.constant 0 : index
    %2 = vector.load %arg5[%c0_7, %c0_8, %c0_9] : memref<1x8x128xf32, #tpu.memory_space<vmem>>, vector<1x8x128xf32>
    %c0_10 = arith.constant 0 : index
    %c0_11 = arith.constant 0 : index
    %c0_12 = arith.constant 0 : index
    %3 = vector.load %arg6[%c0_10, %c0_11, %c0_12] : memref<1x8x128xf32, #tpu.memory_space<vmem>>, vector<1x8x128xf32>
    %c64_i32 = arith.constant 64 : i32
    %4 = tpu.dynamic_rotate %0 by %c64_i32 dim 3 : vector<1x4x8x128xf32>, i32 -> vector<1x4x8x128xf32>
    %c64_i32_13 = arith.constant 64 : i32
    %5 = tpu.dynamic_rotate %1 by %c64_i32_13 dim 3 : vector<1x4x8x128xf32>, i32 -> vector<1x4x8x128xf32>
    %6 = vector.shape_cast %2 : vector<1x8x128xf32> to vector<1x1x8x128xf32>
    %7 = vector.broadcast %6 : vector<1x1x8x128xf32> to vector<1x4x8x128xf32>
    %8 = arith.mulf %0, %7 : vector<1x4x8x128xf32>
    %9 = vector.shape_cast %3 : vector<1x8x128xf32> to vector<1x1x8x128xf32>
    %10 = vector.broadcast %9 : vector<1x1x8x128xf32> to vector<1x4x8x128xf32>
    %11 = arith.mulf %4, %10 : vector<1x4x8x128xf32>
    %12 = arith.addf %8, %11 : vector<1x4x8x128xf32>
    %c0_14 = arith.constant 0 : index
    %c0_15 = arith.constant 0 : index
    %c0_16 = arith.constant 0 : index
    %c0_17 = arith.constant 0 : index
    %13 = vector.load %arg7[%c0_14, %c0_15, %c0_16, %c0_17] : memref<1x4x8x128xf32, #tpu.memory_space<vmem>>, vector<1x4x8x128xf32>
    tpu.vector_store %arg7[%c0_14, %c0_15, %c0_16, %c0_17], %12 {strides = array<i32>} : memref<1x4x8x128xf32, #tpu.memory_space<vmem>>, vector<1x4x8x128xf32>,
    %14 = vector.shape_cast %2 : vector<1x8x128xf32> to vector<1x1x8x128xf32>
    %15 = vector.broadcast %14 : vector<1x1x8x128xf32> to vector<1x4x8x128xf32>
    %16 = arith.mulf %1, %15 : vector<1x4x8x128xf32>
    %17 = vector.shape_cast %3 : vector<1x8x128xf32> to vector<1x1x8x128xf32>
    %18 = vector.broadcast %17 : vector<1x1x8x128xf32> to vector<1x4x8x128xf32>
    %19 = arith.mulf %5, %18 : vector<1x4x8x128xf32>
    %20 = arith.addf %16, %19 : vector<1x4x8x128xf32>
    %c0_18 = arith.constant 0 : index
    %c0_19 = arith.constant 0 : index
    %c0_20 = arith.constant 0 : index
    %c0_21 = arith.constant 0 : index
    %21 = vector.load %arg8[%c0_18, %c0_19, %c0_20, %c0_21] : memref<1x4x8x128xf32, #tpu.memory_space<vmem>>, vector<1x4x8x128xf32>
    tpu.vector_store %arg8[%c0_18, %c0_19, %c0_20, %c0_21], %20 {strides = array<i32>} : memref<1x4x8x128xf32, #tpu.memory_space<vmem>>, vector<1x4x8x128xf32>,
    return
  }
  func.func @transform_0(%arg0: i32, %arg1: i32, %arg2: i32) -> (i32, i32, i32, i32) {
    %c0_i32 = arith.constant 0 : i32
    %c0_i32_0 = arith.constant 0 : i32
    return %arg1, %arg2, %arg0, %c0_i32 : i32, i32, i32, i32
  }
  func.func @transform_1(%arg0: i32, %arg1: i32, %arg2: i32) -> (i32, i32, i32, i32) {
    %c0_i32 = arith.constant 0 : i32
    %c0_i32_0 = arith.constant 0 : i32
    return %arg1, %arg2, %arg0, %c0_i32 : i32, i32, i32, i32
  }
  func.func @transform_2(%arg0: i32, %arg1: i32, %arg2: i32) -> (i32, i32, i32) {
    %c0_i32 = arith.constant 0 : i32
    %c0_i32_0 = arith.constant 0 : i32
    return %arg1, %arg0, %c0_i32 : i32, i32, i32
  }
  func.func @transform_3(%arg0: i32, %arg1: i32, %arg2: i32) -> (i32, i32, i32) {
    %c0_i32 = arith.constant 0 : i32
    %c0_i32_0 = arith.constant 0 : i32
    return %arg1, %arg0, %c0_i32 : i32, i32, i32
  }
  func.func @transform_4(%arg0: i32, %arg1: i32, %arg2: i32) -> (i32, i32, i32, i32) {
    %c0_i32 = arith.constant 0 : i32
    %c0_i32_0 = arith.constant 0 : i32
    return %arg1, %arg2, %arg0, %c0_i32 : i32, i32, i32, i32
  }
  func.func @transform_5(%arg0: i32, %arg1: i32, %arg2: i32) -> (i32, i32, i32, i32) {
    %c0_i32 = arith.constant 0 : i32
    %c0_i32_0 = arith.constant 0 : i32
    return %arg1, %arg2, %arg0, %c0_i32 : i32, i32, i32, i32
  }
}

</mosaic_0001>

<llo_original>
// kernel: tpu_custom_call.1
$region0: #{tpu_custom_call.1}
  #allocation0 [shape = 'u32[]', space=smem, size = 0x4, offset = 0x4, fixed_abs, tag = 'smem constant byte address 0x4 - core index']
  #allocation1 [shape = 'u32[144,128]{1,0:T(1,128)}', space=vmem, size = 0x12000, scoped, tag = 'internal scratch']
  %s0 = inlined_call_operand.hbm [shape: f32[2,4,8,128], index: 0, kind: input, shape index: {}]
  %s1 = inlined_call_operand.hbm [shape: f32[2,4,8,128], index: 1, kind: input, shape index: {}]
  %s2 = inlined_call_operand.hbm [shape: f32[2,8,128], index: 2, kind: input, shape index: {}]
  %s3 = inlined_call_operand.hbm [shape: f32[2,8,128], index: 3, kind: input, shape index: {}]
  %s4 = inlined_call_operand.hbm [shape: f32[2,4,8,128], index: 4, kind: output, shape index: {0}]
  %s5 = inlined_call_operand.hbm [shape: f32[2,4,8,128], index: 5, kind: output, shape index: {1}]
  %6 = xla_tuple %s4, %s5
  %s7 = sld [smem:[#allocation0]]
  $region73: #{tpu_custom_call.1} parent=0
    _
  %s9 = ssub.s32 1, %s7
  %s10 = scalar_select 0, %s9, %s7
  $region1: #{tpu_custom_call.1} parent=0
    #allocation2 [shape = 'u8[32768]{0}', space=vmem, size = 0x8000, scoped, tag = 'input window, operand 0']
    #allocation3 [shape = 's32[2]{0}', space=sflag, size = 0x8, scoped, tag = 'scoped memory for tpu_custom_call.1']
    #allocation4 [shape = 's32[2]{0}', space=sflag, size = 0x8, scoped, tag = 'scoped memory for tpu_custom_call.1']
    #allocation5 [shape = 'u8[32768]{0}', space=vmem, size = 0x8000, scoped, tag = 'input window, operand 1']
    #allocation6 [shape = 's32[2]{0}', space=sflag, size = 0x8, scoped, tag = 'scoped memory for tpu_custom_call.1']
    #allocation7 [shape = 'u8[8192]{0}', space=vmem, size = 0x2000, scoped, tag = 'input window, operand 2']
    #allocation8 [shape = 'u8[8192]{0}', space=vmem, size = 0x2000, scoped, tag = 'input window, operand 3']
    #allocation9 [shape = 's32[2]{0}', space=sflag, size = 0x8, scoped, tag = 'scoped memory for tpu_custom_call.1']
    #allocation10 [shape = 'u8[32768]{0}', space=vmem, size = 0x8000, scoped, tag = 'output window, operand 0']
    #allocation11 [shape = 'u8[32768]{0}', space=vmem, size = 0x8000, scoped, tag = 'output window, operand 1']
    #allocation12 [shape = 's32[2]{0}', space=sflag, size = 0x8, scoped, tag = 'scoped memory for tpu_custom_call.1']
    %11 = vsyncpa [#allocation3], 0
    %s12 = scalar_lea.sflag [#allocation3], 1
    %13 = vsyncpa %s12, 0
    %14 = vsyncpa [#allocation6], 0
    %s15 = scalar_lea.sflag [#allocation6], 1
    %16 = vsyncpa %s15, 0
    %17 = vsyncpa [#allocation9], 0
    %s18 = scalar_lea.sflag [#allocation9], 1
    %19 = vsyncpa %s18, 0
    %20 = vsyncpa [#allocation4], 0
    %s21 = scalar_lea.sflag [#allocation4], 1
    %22 = vsyncpa %s21, 0
    %23 = vsyncpa [#allocation12], 0
    %s24 = scalar_lea.sflag [#allocation12], 1
    %25 = vsyncpa %s24, 0
    loop: start=0, step=1, limit=4
    $region2: #{tpu_custom_call.1} parent=1 // loop_pre_header
      _
    $region3: #{tpu_custom_call.1} parent=1 // loop_header
      %s27 = sphi 0, %s31
      %p28 = scmp.ge.s32.totalorder %s27, 4
      %s34 = sphi 0, %s53
      %s35 = sphi 0, %s49
      %s36 = sphi 0, %s45
      %s37 = sphi 0, %s34
      %s38 = sphi 0, %s35
      %s39 = sphi 0, %s36
      %s40 = sphi 0, %s37
      %s41 = sphi 0, %s38
      %s42 = sphi 0, %s39
      %s60 = sphi 0, %s62
      %s63 = sphi 0, %s60
      %s64 = sphi 0, %s63
      %s80 = sphi 0, %s64
      %s90 = sphi 0, %s92
      %s93 = sphi 0, %s90
      %s94 = sphi 0, %s93
      %s110 = sphi 0, %s94
      %s118 = sphi 0, %s120
      %s121 = sphi 0, %s118
      %s122 = sphi 0, %s121
      %s138 = sphi 0, %s122
      %s146 = sphi 0, %s148
      %s149 = sphi 0, %s146
      %s150 = sphi 0, %s149
      %s166 = sphi 0, %s150
      %s176 = sphi 0, %s178
      %s179 = sphi 0, %s176
      %s180 = sphi 0, %s179
      %s196 = sphi 0, %s180
      %s206 = sphi 0, %s208
      %s209 = sphi 0, %s206
      %s210 = sphi 0, %s209
      %s226 = sphi 0, %s210
    $region4: #{tpu_custom_call.1} parent=1 // loop_header_branch
      %30 = sbr.rel (%p28) target = $region8
    $region5: #{tpu_custom_call.1} parent=1 // loop_body
      %s32 = ssub.s32 %s27, 1
      %s33 = ssub.s32 %s27, 2
      %s43 = sadd.s32 1, %s36
      %p44 = scmp.ge.s32.totalorder %s43, 1
      %s45 = scalar_select %p44, 0, %s43
      %s46 = sadd.s32 1, %s35
      %s47 = scalar_select %p44, %s46, %s35
      %p48 = scmp.ge.s32.totalorder %s47, 2
      %s49 = scalar_select %p48, 0, %s47
      %s50 = sadd.s32 1, %s34
      %s51 = scalar_select %p48, %s50, %s34
      %p52 = scmp.ge.s32.totalorder %s51, 1
      %s53 = scalar_select %p52, 0, %s51
      %s54 = ssub.s32 %s35, %s49
      %s55 = ssub.s32 %s36, %s45
      %s56 = sor.u32 %s54, %s55
      %s57 = ssub.s32 %s34, %s53
      %s58 = sor.u32 %s56, %s57
      %p59 = scmp.eq.s32.totalorder %s58, 0
      %s61 = sadd.s32 %s60, 1
      %s62 = scalar_select %p59, %s60, %s61
      %p65 = pneg %p59
      %p66 = scmp.eq.s32.totalorder %s27, 1
      %p67 = por %p65, %p66
      %p68 = scmp.ne.s32.totalorder %s60, %s63
      %p69 = scmp.eq.s32.totalorder %s27, 0
      %p70 = por %p68, %p69
      %p71 = scmp.ne.s32.totalorder %s60, %s63
      %p72 = scmp.eq.s32.totalorder %s32, 1
      %p73 = por %p71, %p72
      %p74 = scmp.ne.s32.totalorder %s63, %s64
      %p75 = scmp.eq.s32.totalorder %s32, 0
      %p76 = por %p74, %p75
      %p77 = scmp.ne.s32.totalorder %s63, %s64
      %p78 = scmp.eq.s32.totalorder %s33, 1
      %p79 = por %p77, %p78
      %p81 = scmp.ne.s32.totalorder %s64, %s80
      %p82 = scmp.eq.s32.totalorder %s33, 0
      %p83 = por %p81, %p82
      %s84 = ssub.s32 %s35, %s49
      %s85 = ssub.s32 %s36, %s45
      %s86 = sor.u32 %s84, %s85
      %s87 = ssub.s32 %s34, %s53
      %s88 = sor.u32 %s86, %s87
      %p89 = scmp.eq.s32.totalorder %s88, 0
      %s91 = sadd.s32 %s90, 1
      %s92 = scalar_select %p89, %s90, %s91
      %p95 = pneg %p89
      %p96 = scmp.eq.s32.totalorder %s27, 1
      %p97 = por %p95, %p96
      %p98 = scmp.ne.s32.totalorder %s90, %s93
      %p99 = scmp.eq.s32.totalorder %s27, 0
      %p100 = por %p98, %p99
      %p101 = scmp.ne.s32.totalorder %s90, %s93
      %p102 = scmp.eq.s32.totalorder %s32, 1
      %p103 = por %p101, %p102
      %p104 = scmp.ne.s32.totalorder %s93, %s94
      %p105 = scmp.eq.s32.totalorder %s32, 0
      %p106 = por %p104, %p105
      %p107 = scmp.ne.s32.totalorder %s93, %s94
      %p108 = scmp.eq.s32.totalorder %s33, 1
      %p109 = por %p107, %p108
      %p111 = scmp.ne.s32.totalorder %s94, %s110
      %p112 = scmp.eq.s32.totalorder %s33, 0
      %p113 = por %p111, %p112
      %s114 = ssub.s32 %s35, %s49
      %s115 = ssub.s32 %s34, %s53
      %s116 = sor.u32 %s114, %s115
      %p117 = scmp.eq.s32.totalorder %s116, 0
      %s119 = sadd.s32 %s118, 1
      %s120 = scalar_select %p117, %s118, %s119
      %p123 = pneg %p117
      %p124 = scmp.eq.s32.totalorder %s27, 1
      %p125 = por %p123, %p124
      %p126 = scmp.ne.s32.totalorder %s118, %s121
      %p127 = scmp.eq.s32.totalorder %s27, 0
      %p128 = por %p126, %p127
      %p129 = scmp.ne.s32.totalorder %s118, %s121
      %p130 = scmp.eq.s32.totalorder %s32, 1
      %p131 = por %p129, %p130
      %p132 = scmp.ne.s32.totalorder %s121, %s122
      %p133 = scmp.eq.s32.totalorder %s32, 0
      %p134 = por %p132, %p133
      %p135 = scmp.ne.s32.totalorder %s121, %s122
      %p136 = scmp.eq.s32.totalorder %s33, 1
      %p137 = por %p135, %p136
      %p139 = scmp.ne.s32.totalorder %s122, %s138
      %p140 = scmp.eq.s32.totalorder %s33, 0
      %p141 = por %p139, %p140
      %s142 = ssub.s32 %s35, %s49
      %s143 = ssub.s32 %s34, %s53
      %s144 = sor.u32 %s142, %s143
      %p145 = scmp.eq.s32.totalorder %s144, 0
      %s147 = sadd.s32 %s146, 1
      %s148 = scalar_select %p145, %s146, %s147
      %p151 = pneg %p145
      %p152 = scmp.eq.s32.totalorder %s27, 1
      %p153 = por %p151, %p152
      %p154 = scmp.ne.s32.totalorder %s146, %s149
      %p155 = scmp.eq.s32.totalorder %s27, 0
      %p156 = por %p154, %p155
      %p157 = scmp.ne.s32.totalorder %s146, %s149
      %p158 = scmp.eq.s32.totalorder %s32, 1
      %p159 = por %p157, %p158
      %p160 = scmp.ne.s32.totalorder %s149, %s150
      %p161 = scmp.eq.s32.totalorder %s32, 0
      %p162 = por %p160, %p161
      %p163 = scmp.ne.s32.totalorder %s149, %s150
      %p164 = scmp.eq.s32.totalorder %s33, 1
      %p165 = por %p163, %p164
      %p167 = scmp.ne.s32.totalorder %s150, %s166
      %p168 = scmp.eq.s32.totalorder %s33, 0
      %p169 = por %p167, %p168
      %s170 = ssub.s32 %s35, %s49
      %s171 = ssub.s32 %s36, %s45
      %s172 = sor.u32 %s170, %s171
      %s173 = ssub.s32 %s34, %s53
      %s174 = sor.u32 %s172, %s173
      %p175 = scmp.eq.s32.totalorder %s174, 0
      %s177 = sadd.s32 %s176, 1
      %s178 = scalar_select %p175, %s176, %s177
      %p181 = pneg %p175
      %p182 = scmp.eq.s32.totalorder %s27, 1
      %p183 = por %p181, %p182
      %p184 = scmp.ne.s32.totalorder %s176, %s179
      %p185 = scmp.eq.s32.totalorder %s27, 0
      %p186 = por %p184, %p185
      %p187 = scmp.ne.s32.totalorder %s176, %s179
      %p188 = scmp.eq.s32.totalorder %s32, 1
      %p189 = por %p187, %p188
      %p190 = scmp.ne.s32.totalorder %s179, %s180
      %p191 = scmp.eq.s32.totalorder %s32, 0
      %p192 = por %p190, %p191
      %p193 = scmp.ne.s32.totalorder %s179, %s180
      %p194 = scmp.eq.s32.totalorder %s33, 1
      %p195 = por %p193, %p194
      %p197 = scmp.ne.s32.totalorder %s180, %s196
      %p198 = scmp.eq.s32.totalorder %s33, 0
      %p199 = por %p197, %p198
      %s200 = ssub.s32 %s35, %s49
      %s201 = ssub.s32 %s36, %s45
      %s202 = sor.u32 %s200, %s201
      %s203 = ssub.s32 %s34, %s53
      %s204 = sor.u32 %s202, %s203
      %p205 = scmp.eq.s32.totalorder %s204, 0
      %s207 = sadd.s32 %s206, 1
      %s208 = scalar_select %p205, %s206, %s207
      %p211 = pneg %p205
      %p212 = scmp.eq.s32.totalorder %s27, 1
      %p213 = por %p211, %p212
      %p214 = scmp.ne.s32.totalorder %s206, %s209
      %p215 = scmp.eq.s32.totalorder %s27, 0
      %p216 = por %p214, %p215
      %p217 = scmp.ne.s32.totalorder %s206, %s209
      %p218 = scmp.eq.s32.totalorder %s32, 1
      %p219 = por %p217, %p218
      %p220 = scmp.ne.s32.totalorder %s209, %s210
      %p221 = scmp.eq.s32.totalorder %s32, 0
      %p222 = por %p220, %p221
      %p223 = scmp.ne.s32.totalorder %s209, %s210
      %p224 = scmp.eq.s32.totalorder %s33, 1
      %p225 = por %p223, %p224
      %p227 = scmp.ne.s32.totalorder %s210, %s226
      %p228 = scmp.eq.s32.totalorder %s33, 0
      %p229 = por %p227, %p228
      %p230 = scmp.le.s32.totalorder 1, %s27
      %p231 = scmp.lt.s32.totalorder %s27, 3
      %p232 = pnand %p230, %p231
      %p233 = pneg %p232
      // Predicated region
      $region9: #{tpu_custom_call.1} parent=5 // pred_check
        _
      $region10: #{tpu_custom_call.1} parent=5 // pred_check_branch
        %235 = sbr.rel (%p232) target = $region12
      $region11: #{tpu_custom_call.1} parent=5 // pred_region
        %s236 = ssub.s32 %s27, 1
      $region12: #{tpu_custom_call.1} parent=5 // pred_fallthru
        _
      %p237 = scmp.lt.s32.totalorder %s27, 2
      // Predicated region
      $region13: #{tpu_custom_call.1} parent=5 // pred_check
        %p238 = pneg %p237
      $region14: #{tpu_custom_call.1} parent=5 // pred_check_branch
        %240 = sbr.rel (%p238) target = $region16
      $region15: #{tpu_custom_call.1} parent=5 // pred_region
        // Predicated region
        $region17: #{tpu_custom_call.1} parent=15 // pred_check
          %p241 = pneg %p70
        $region18: #{tpu_custom_call.1} parent=15 // pred_check_branch
          %243 = sbr.rel (%p241) target = $region20
        $region19: #{tpu_custom_call.1} parent=15 // pred_region
          %s244 = sand.u32 %s60, 1
          %s245 = scalar_lea.sflag [#allocation3], %s244
          %s246 = sand.u32 %s60, 1
          %s247 = smul.addr %s246, 32
          %s248 = scalar_lea.vmem [#allocation2], %s247
          %s249 = smul.u32 4, %s36
          %s251 = ssub.s32 512, 512
          %252 = vsyncadd %s245, %s251
          %s253 = sadd.s32 %s34, %s249
          %s254 = smul.addr %s35, 4
          %s255 = sadd.s32 %s253, %s254
          %s256 = smul.addr %s255, 128
          %s257 = scalar_lea.hbm %s0, %s256
          %s258 = sshll.u32 %s248, 4
          %s259 = int_to_ptr.vmem [resolvable:$true] %s258
          %264 = dma.hbm_to_vmem [thread:$0]  %s257, 512, %s259, %s245, 128, 128, 8
        $region20: #{tpu_custom_call.1} parent=15 // pred_fallthru
          _
        // Predicated region
        $region21: #{tpu_custom_call.1} parent=15 // pred_check
          %p265 = pneg %p100
        $region22: #{tpu_custom_call.1} parent=15 // pred_check_branch
          %267 = sbr.rel (%p265) target = $region24
        $region23: #{tpu_custom_call.1} parent=15 // pred_region
          %s268 = sand.u32 %s27, 1
          %s269 = scalar_lea.sflag [#allocation6], %s268
          %s270 = sand.u32 %s90, 1
          %s271 = smul.addr %s270, 32
          %s272 = scalar_lea.vmem [#allocation5], %s271
          %s273 = smul.u32 4, %s36
          %s275 = ssub.s32 512, 512
          %276 = vsyncadd %s269, %s275
          %s277 = sadd.s32 %s34, %s273
          %s278 = smul.addr %s35, 4
          %s279 = sadd.s32 %s277, %s278
          %s280 = smul.addr %s279, 128
          %s281 = scalar_lea.hbm %s1, %s280
          %s282 = sshll.u32 %s272, 4
          %s283 = int_to_ptr.vmem [resolvable:$true] %s282
          %288 = dma.hbm_to_vmem [thread:$0]  %s281, 512, %s283, %s269, 128, 128, 8
        $region24: #{tpu_custom_call.1} parent=15 // pred_fallthru
          _
        // Predicated region
        $region25: #{tpu_custom_call.1} parent=15 // pred_check
          %p289 = pneg %p128
        $region26: #{tpu_custom_call.1} parent=15 // pred_check_branch
          %291 = sbr.rel (%p289) target = $region28
        $region27: #{tpu_custom_call.1} parent=15 // pred_region
          %s292 = sand.u32 %s27, 1
          %s293 = scalar_lea.sflag [#allocation6], %s292
          %s294 = sand.u32 %s118, 1
          %s295 = smul.addr %s294, 8
          %s296 = scalar_lea.vmem [#allocation7], %s295
          %s298 = ssub.s32 128, 128
          %299 = vsyncadd %s293, %s298
          %s300 = sadd.s32 %s34, %s35
          %s301 = smul.addr %s300, 128
          %s302 = scalar_lea.hbm %s2, %s301
          %s304 = sshll.u32 %s296, 4
          %s305 = int_to_ptr.vmem [resolvable:$true] %s304
          %307 = dma.hbm_to_vmem [thread:$0]  %s302, 128, %s305, %s293
        $region28: #{tpu_custom_call.1} parent=15 // pred_fallthru
          _
        // Predicated region
        $region29: #{tpu_custom_call.1} parent=15 // pred_check
          %p308 = pneg %p156
        $region30: #{tpu_custom_call.1} parent=15 // pred_check_branch
          %310 = sbr.rel (%p308) target = $region32
        $region31: #{tpu_custom_call.1} parent=15 // pred_region
          %s311 = sand.u32 %s146, 1
          %s312 = scalar_lea.sflag [#allocation9], %s311
          %s313 = sand.u32 %s146, 1
          %s314 = smul.addr %s313, 8
          %s315 = scalar_lea.vmem [#allocation8], %s314
          %s317 = ssub.s32 128, 128
          %318 = vsyncadd %s312, %s317
          %s319 = sadd.s32 %s34, %s35
          %s320 = smul.addr %s319, 128
          %s321 = scalar_lea.hbm %s3, %s320
          %s323 = sshll.u32 %s315, 4
          %s324 = int_to_ptr.vmem [resolvable:$true] %s323
          %326 = dma.hbm_to_vmem [thread:$0]  %s321, 128, %s324, %s312
        $region32: #{tpu_custom_call.1} parent=15 // pred_fallthru
          _
      $region16: #{tpu_custom_call.1} parent=5 // pred_fallthru
        _
      %p327 = scmp.le.s32.totalorder 1, %s27
      %p328 = scmp.lt.s32.totalorder %s27, 3
      %p329 = pnand %p327, %p328
      %p330 = pneg %p329
      // Predicated region
      $region33: #{tpu_custom_call.1} parent=5 // pred_check
        _
      $region34: #{tpu_custom_call.1} parent=5 // pred_check_branch
        %332 = sbr.rel (%p329) target = $region36
      $region35: #{tpu_custom_call.1} parent=5 // pred_region
        %s333 = ssub.s32 %s27, 1
        %s334 = sand.u32 %s63, 1
        %s335 = scalar_lea.sflag [#allocation3], %s334
        %s336 = sand.u32 %s63, 1
        %s337 = smul.addr %s336, 32
        %s338 = scalar_lea.vmem [#allocation2], %s337
        // Predicated region
        $region37: #{tpu_custom_call.1} parent=35 // pred_check
          %p339 = pneg %p76
        $region38: #{tpu_custom_call.1} parent=35 // pred_check_branch
          %341 = sbr.rel (%p339) target = $region40
        $region39: #{tpu_custom_call.1} parent=35 // pred_region
          %342 = dma.done %s335, 512
        $region40: #{tpu_custom_call.1} parent=35 // pred_fallthru
          _
        %s343 = sand.u32 %s32, 1
        %s344 = scalar_lea.sflag [#allocation6], %s343
        %s345 = sand.u32 %s93, 1
        %s346 = smul.addr %s345, 32
        %s347 = scalar_lea.vmem [#allocation5], %s346
        // Predicated region
        $region41: #{tpu_custom_call.1} parent=35 // pred_check
          %p348 = pneg %p106
        $region42: #{tpu_custom_call.1} parent=35 // pred_check_branch
          %350 = sbr.rel (%p348) target = $region44
        $region43: #{tpu_custom_call.1} parent=35 // pred_region
          %351 = dma.done %s344, 512
        $region44: #{tpu_custom_call.1} parent=35 // pred_fallthru
          _
        %s352 = sand.u32 %s32, 1
        %s353 = scalar_lea.sflag [#allocation6], %s352
        %s354 = sand.u32 %s121, 1
        %s355 = smul.addr %s354, 8
        %s356 = scalar_lea.vmem [#allocation7], %s355
        // Predicated region
        $region45: #{tpu_custom_call.1} parent=35 // pred_check
          %p357 = pneg %p134
        $region46: #{tpu_custom_call.1} parent=35 // pred_check_branch
          %359 = sbr.rel (%p357) target = $region48
        $region47: #{tpu_custom_call.1} parent=35 // pred_region
          %360 = dma.done %s353, 128
        $region48: #{tpu_custom_call.1} parent=35 // pred_fallthru
          _
        %s361 = sand.u32 %s149, 1
        %s362 = scalar_lea.sflag [#allocation9], %s361
        %s363 = sand.u32 %s149, 1
        %s364 = smul.addr %s363, 8
        %s365 = scalar_lea.vmem [#allocation8], %s364
        // Predicated region
        $region49: #{tpu_custom_call.1} parent=35 // pred_check
          %p366 = pneg %p162
        $region50: #{tpu_custom_call.1} parent=35 // pred_check_branch
          %368 = sbr.rel (%p366) target = $region52
        $region51: #{tpu_custom_call.1} parent=35 // pred_region
          %369 = dma.done %s362, 128
        $region52: #{tpu_custom_call.1} parent=35 // pred_fallthru
          _
        %s370 = sand.u32 %s63, 1
        %s371 = scalar_lea.sflag [#allocation3], %s370
        %s372 = sand.u32 %s63, 1
        %s373 = smul.addr %s372, 32
        %s374 = scalar_lea.vmem [#allocation2], %s373
        %p375 = pneg %p76
        %p376 = pneg %p73
        %s377 = sand.u32 %s32, 1
        %s378 = scalar_lea.sflag [#allocation6], %s377
        %s379 = sand.u32 %s93, 1
        %s380 = smul.addr %s379, 32
        %s381 = scalar_lea.vmem [#allocation5], %s380
        %p382 = pneg %p106
        %p383 = pneg %p103
        %s384 = sand.u32 %s32, 1
        %s385 = scalar_lea.sflag [#allocation6], %s384
        %s386 = sand.u32 %s121, 1
        %s387 = smul.addr %s386, 8
        %s388 = scalar_lea.vmem [#allocation7], %s387
        %p389 = pneg %p134
        %p390 = pneg %p131
        %s391 = sand.u32 %s149, 1
        %s392 = scalar_lea.sflag [#allocation9], %s391
        %s393 = sand.u32 %s149, 1
        %s394 = smul.addr %s393, 8
        %s395 = scalar_lea.vmem [#allocation8], %s394
        %p396 = pneg %p162
        %p397 = pneg %p159
        %p398 = pneg %p192
        %p399 = pneg %p189
        %s400 = sand.u32 %s179, 1
        %s401 = scalar_lea.sflag [#allocation4], %s400
        %s402 = sand.u32 %s179, 1
        %s403 = smul.addr %s402, 32
        %s404 = scalar_lea.vmem [#allocation10], %s403
        %p405 = pneg %p222
        %p406 = pneg %p219
        %s407 = sand.u32 %s209, 1
        %s408 = scalar_lea.sflag [#allocation12], %s407
        %s409 = sand.u32 %s209, 1
        %s410 = smul.addr %s409, 32
        %s411 = scalar_lea.vmem [#allocation11], %s410
        %s412 = smul.u32 4, %s39
        %s413 = smul.u32 4, %s39
        %s414 = smul.u32 4, %s39
        %s415 = smul.u32 4, %s39
        %v416 = vld [vmem:[%s338] sm:$0xff]
        %v417 = vld [vmem:[%s338 + $0x8] sm:$0xff]
        %v418 = vld [vmem:[%s338 + $0x10] sm:$0xff]
        %v419 = vld [vmem:[%s338 + $0x18] sm:$0xff]
        %v420 = vld [vmem:[%s347] sm:$0xff]
        %v421 = vld [vmem:[%s347 + $0x8] sm:$0xff]
        %v422 = vld [vmem:[%s347 + $0x10] sm:$0xff]
        %v423 = vld [vmem:[%s347 + $0x18] sm:$0xff]
        %v424 = vld [vmem:[%s356] sm:$0xff]
        %v425 = vld [vmem:[%s365] sm:$0xff]
        %426 = vrot.lane.b32.xlu0 %v416, 64
        %v427 = vpop.permute.xlu0 %426
        %428 = vrot.lane.b32.xlu0 %v417, 64
        %v429 = vpop.permute.xlu0 %428
        %430 = vrot.lane.b32.xlu0 %v418, 64
        %v431 = vpop.permute.xlu0 %430
        %432 = vrot.lane.b32.xlu0 %v419, 64
        %v433 = vpop.permute.xlu0 %432
        %434 = vrot.lane.b32.xlu0 %v420, 64
        %v435 = vpop.permute.xlu0 %434
        %436 = vrot.lane.b32.xlu0 %v421, 64
        %v437 = vpop.permute.xlu0 %436
        %438 = vrot.lane.b32.xlu0 %v422, 64
        %v439 = vpop.permute.xlu0 %438
        %440 = vrot.lane.b32.xlu0 %v423, 64
        %v441 = vpop.permute.xlu0 %440
        %v442 = vmul.f32 %v416, %v424
        %v443 = vmul.f32 %v417, %v424
        %v444 = vmul.f32 %v418, %v424
        %v445 = vmul.f32 %v419, %v424
        %v446 = vmul.f32 %v427, %v425
        %v447 = vmul.f32 %v429, %v425
        %v448 = vmul.f32 %v431, %v425
        %v449 = vmul.f32 %v433, %v425
        %v450 = vadd.f32 %v442, %v446
        %v451 = vadd.f32 %v443, %v447
        %v452 = vadd.f32 %v444, %v448
        %v453 = vadd.f32 %v445, %v449
        %454 = vst [vmem:[%s404] sm:$0xff] %v450
        %455 = vst [vmem:[%s404 + $0x8] sm:$0xff] %v451
        %456 = vst [vmem:[%s404 + $0x10] sm:$0xff] %v452
        %457 = vst [vmem:[%s404 + $0x18] sm:$0xff] %v453
        %v458 = vmul.f32 %v420, %v424
        %v459 = vmul.f32 %v421, %v424
        %v460 = vmul.f32 %v422, %v424
        %v461 = vmul.f32 %v423, %v424
        %v462 = vmul.f32 %v435, %v425
        %v463 = vmul.f32 %v437, %v425
        %v464 = vmul.f32 %v439, %v425
        %v465 = vmul.f32 %v441, %v425
        %v466 = vadd.f32 %v458, %v462
        %v467 = vadd.f32 %v459, %v463
        %v468 = vadd.f32 %v460, %v464
        %v469 = vadd.f32 %v461, %v465
        %470 = vst [vmem:[%s411] sm:$0xff] %v466
        %471 = vst [vmem:[%s411 + $0x8] sm:$0xff] %v467
        %472 = vst [vmem:[%s411 + $0x10] sm:$0xff] %v468
        %473 = vst [vmem:[%s411 + $0x18] sm:$0xff] %v469
        %s474 = sand.u32 %s179, 1
        %s475 = scalar_lea.sflag [#allocation4], %s474
        %s476 = sand.u32 %s179, 1
        %s477 = smul.addr %s476, 32
        %s478 = scalar_lea.vmem [#allocation10], %s477
        %s479 = sand.u32 %s209, 1
        %s480 = scalar_lea.sflag [#allocation12], %s479
        %s481 = sand.u32 %s209, 1
        %s482 = smul.addr %s481, 32
        %s483 = scalar_lea.vmem [#allocation11], %s482
        // Predicated region
        $region53: #{tpu_custom_call.1} parent=35 // pred_check
          %p484 = pneg %p189
        $region54: #{tpu_custom_call.1} parent=35 // pred_check_branch
          %486 = sbr.rel (%p484) target = $region56
        $region55: #{tpu_custom_call.1} parent=35 // pred_region
          %s487 = smul.u32 4, %s39
          %s489 = ssub.s32 512, 512
          %490 = vsyncadd %s475, %s489
          %s491 = sadd.s32 %s37, %s487
          %s492 = smul.addr %s38, 4
          %s493 = sadd.s32 %s491, %s492
          %s494 = smul.addr %s493, 128
          %s495 = scalar_lea.hbm %s4, %s494
          %s496 = sshll.u32 %s478, 4
          %s497 = int_to_ptr.vmem [resolvable:$true] %s496
          %502 = dma.vmem_to_hbm [thread:$0]  %s497, 512, %s495, %s475, 128, 128, 8
        $region56: #{tpu_custom_call.1} parent=35 // pred_fallthru
          _
        // Predicated region
        $region57: #{tpu_custom_call.1} parent=35 // pred_check
          %p503 = pneg %p219
        $region58: #{tpu_custom_call.1} parent=35 // pred_check_branch
          %505 = sbr.rel (%p503) target = $region60
        $region59: #{tpu_custom_call.1} parent=35 // pred_region
          %s506 = smul.u32 4, %s39
          %s508 = ssub.s32 512, 512
          %509 = vsyncadd %s480, %s508
          %s510 = sadd.s32 %s37, %s506
          %s511 = smul.addr %s38, 4
          %s512 = sadd.s32 %s510, %s511
          %s513 = smul.addr %s512, 128
          %s514 = scalar_lea.hbm %s5, %s513
          %s515 = sshll.u32 %s483, 4
          %s516 = int_to_ptr.vmem [resolvable:$true] %s515
          %521 = dma.vmem_to_hbm [thread:$0]  %s516, 512, %s514, %s480, 128, 128, 8
        $region60: #{tpu_custom_call.1} parent=35 // pred_fallthru
          _
      $region36: #{tpu_custom_call.1} parent=5 // pred_fallthru
        _
      %p522 = scmp.le.s32.totalorder 2, %s27
      // Predicated region
      $region61: #{tpu_custom_call.1} parent=5 // pred_check
        %p523 = pneg %p522
      $region62: #{tpu_custom_call.1} parent=5 // pred_check_branch
        %525 = sbr.rel (%p523) target = $region64
      $region63: #{tpu_custom_call.1} parent=5 // pred_region
        %s526 = ssub.s32 %s27, 2
        // Predicated region
        $region65: #{tpu_custom_call.1} parent=63 // pred_check
          %p527 = pneg %p195
        $region66: #{tpu_custom_call.1} parent=63 // pred_check_branch
          %529 = sbr.rel (%p527) target = $region68
        $region67: #{tpu_custom_call.1} parent=63 // pred_region
          %s530 = sand.u32 %s180, 1
          %s531 = scalar_lea.sflag [#allocation4], %s530
          %s532 = sand.u32 %s180, 1
          %s533 = smul.addr %s532, 32
          %s534 = scalar_lea.vmem [#allocation10], %s533
          %535 = dma.done %s531, 512
        $region68: #{tpu_custom_call.1} parent=63 // pred_fallthru
          _
        // Predicated region
        $region69: #{tpu_custom_call.1} parent=63 // pred_check
          %p536 = pneg %p225
        $region70: #{tpu_custom_call.1} parent=63 // pred_check_branch
          %538 = sbr.rel (%p536) target = $region72
        $region71: #{tpu_custom_call.1} parent=63 // pred_region
          %s539 = sand.u32 %s210, 1
          %s540 = scalar_lea.sflag [#allocation12], %s539
          %s541 = sand.u32 %s210, 1
          %s542 = smul.addr %s541, 32
          %s543 = scalar_lea.vmem [#allocation11], %s542
          %544 = dma.done %s540, 512
        $region72: #{tpu_custom_call.1} parent=63 // pred_fallthru
          _
      $region64: #{tpu_custom_call.1} parent=5 // pred_fallthru
        _
    $region6: #{tpu_custom_call.1} parent=1 // loop_footer
      %s31 = sadd.s32 1, %s27
    $region7: #{tpu_custom_call.1} parent=1 // loop_footer_branch
      %26 = sbr.rel target = $region3
    $region8: #{tpu_custom_call.1} parent=1 // loop_exit
      _
    %545 = vsyncpa [#allocation3], 1
    %s546 = scalar_lea.sflag [#allocation3], 1
    %547 = vsyncpa %s546, 1
    %548 = vsyncpa [#allocation6], 1
    %s549 = scalar_lea.sflag [#allocation6], 1
    %550 = vsyncpa %s549, 1
    %551 = vsyncpa [#allocation9], 1
    %s552 = scalar_lea.sflag [#allocation9], 1
    %553 = vsyncpa %s552, 1
    %554 = vsyncpa [#allocation4], 1
    %s555 = scalar_lea.sflag [#allocation4], 1
    %556 = vsyncpa %s555, 1
    %557 = vsyncpa [#allocation12], 1
    %s558 = scalar_lea.sflag [#allocation12], 1
    %559 = vsyncpa %s558, 1

</llo_original>
